<compile_context>
chip_gen: v7x
topology: tpu7x:2x2x1
jax: 0.10.0
libtpu: 0.0.40
codegen_flags: <defaults>
</compile_context>

<pallas_src>
import jax
import jax.numpy as jnp
from jax.experimental import pallas as pl
from jax.experimental.pallas import tpu as pltpu

NEG_SLOPE = 0.01  # PyTorch nn.LeakyReLU default negative_slope


def _leaky_relu(h):
    return jnp.where(h > 0, h, NEG_SLOPE * h)


def comm_policy_kernel(x_ref,
                       w1_ref, b1_ref, w2_ref, b2_ref, w3_ref, b3_ref,
                       wh_ref, bh_ref,
                       out_ref):
    """One GaitPolicy half (selected by the grid index) fully resident in VMEM.

    grid=(2,): program 0 = left half, program 1 = right half.  Both halves read
    the same x block; weights come from the stacked (2, in, out) arrays with the
    leading axis squeezed by the BlockSpec.  The mean/latent heads are pre-fused
    into (wh, bh), so the final matmul writes a single packed
    (batch, half_act + latent_dim) slab.
    """
    bf16 = jnp.bfloat16
    h = x_ref[...]                                                   # bf16 in
    h = _leaky_relu(jnp.dot(h, w1_ref[...],
                            preferred_element_type=jnp.float32) + b1_ref[...])
    h = _leaky_relu(jnp.dot(h.astype(bf16), w2_ref[...],
                            preferred_element_type=jnp.float32) + b2_ref[...])
    h = _leaky_relu(jnp.dot(h.astype(bf16), w3_ref[...],
                            preferred_element_type=jnp.float32) + b3_ref[...])
    out_ref[...] = (jnp.dot(h.astype(bf16), wh_ref[...],
                            preferred_element_type=jnp.float32) + bh_ref[...])


def _stack(left, right, name):
    return jnp.stack((left[name], right[name]), axis=0)


@jax.jit
def comm_policy_forward(x, left_params, right_params):
    """CommPolicy.forward: mean/std cat'd along dim=0, latent = right half's."""
    batch, obs_dim = x.shape
    h1 = left_params["w1"].shape[1]
    h2 = left_params["w2"].shape[1]
    h3 = left_params["w3"].shape[1]
    half_act = left_params["wm"].shape[1]
    latent_dim = left_params["wl"].shape[1]
    head_dim = half_act + latent_dim

    bf16 = jnp.bfloat16
    xb = x.astype(bf16)
    # Stack left/right along a leading axis; fuse the mean|latent heads.
    w1 = _stack(left_params, right_params, "w1").astype(bf16)
    w2 = _stack(left_params, right_params, "w2").astype(bf16)
    w3 = _stack(left_params, right_params, "w3").astype(bf16)
    b1 = _stack(left_params, right_params, "b1")
    b2 = _stack(left_params, right_params, "b2")
    b3 = _stack(left_params, right_params, "b3")
    wh = jnp.stack(
        (jnp.concatenate((left_params["wm"], left_params["wl"]), axis=1),
         jnp.concatenate((right_params["wm"], right_params["wl"]), axis=1)),
        axis=0).astype(bf16)
    bh = jnp.stack(
        (jnp.concatenate((left_params["bm"], left_params["bl"]), axis=1),
         jnp.concatenate((right_params["bm"], right_params["bl"]), axis=1)),
        axis=0)

    def half_spec(r, c):
        # (2, r, c) array: one (r, c) slice per grid step, leading axis squeezed.
        return pl.BlockSpec((None, r, c), lambda i: (i, 0, 0))

    packed = pl.pallas_call(
        comm_policy_kernel,
        grid=(2,),
        in_specs=[
            pl.BlockSpec((batch, obs_dim), lambda i: (0, 0)),  # x shared by both
            half_spec(obs_dim, h1), half_spec(1, h1),
            half_spec(h1, h2), half_spec(1, h2),
            half_spec(h2, h3), half_spec(1, h3),
            half_spec(h3, head_dim), half_spec(1, head_dim),
        ],
        out_specs=half_spec(batch, head_dim),
        out_shape=jax.ShapeDtypeStruct((2, batch, head_dim), jnp.float32),
        compiler_params=pltpu.CompilerParams(
            dimension_semantics=("parallel",)),   # halves -> 2 TCs on v7x
    )(xb, w1, b1, w2, b2, w3, b3, wh, bh)

    # (2, batch, half_act) in row-major order IS torch.cat((left, right), dim=0).
    mean = packed[:, :, :half_act].reshape(2 * batch, half_act)
    latent = packed[1, :, half_act:]     # PyTorch `_` ends up = right half's latent
    # std is state-independent: exp(log_std) broadcast; hoisted out of the kernel.
    log_std = jnp.stack(
        (left_params["log_std"], right_params["log_std"]), axis=0)  # (2,1,A/2)
    std = jnp.broadcast_to(jnp.exp(log_std),
                           (2, batch, half_act)).reshape(2 * batch, half_act)
    return mean, std, latent


def make_gait_params(key, obs_dim, latent_dim, half_action_dim,
                     hidden_dims=(128, 128, 128)):
    """Deterministic synthetic parameters for one GaitPolicy half (f32)."""
    ks = jax.random.split(key, 6)
    h1, h2, h3 = hidden_dims

    def lin(k, fan_in, fan_out):
        scale = 1.0 / jnp.sqrt(jnp.float32(fan_in))
        return (jax.random.uniform(k, (fan_in, fan_out), jnp.float32,
                                   -scale, scale),
                jnp.zeros((1, fan_out), jnp.float32))

    w1, b1 = lin(ks[0], obs_dim, h1)
    w2, b2 = lin(ks[1], h1, h2)
    w3, b3 = lin(ks[2], h2, h3)
    wm, bm = lin(ks[3], h3, half_action_dim)
    wl, bl = lin(ks[4], h3, latent_dim)
    log_std = jnp.full((1, half_action_dim), -1.0, jnp.float32)
    return dict(w1=w1, b1=b1, w2=w2, b2=b2, w3=w3, b3=b3,
                wm=wm, bm=bm, wl=wl, bl=bl, log_std=log_std)


# ----------------------------- pure-JAX reference -----------------------------
def _gait_ref(x, p):
    h = x
    for wn, bn in (("w1", "b1"), ("w2", "b2"), ("w3", "b3")):
        h = _leaky_relu(h @ p[wn] + p[bn])
    mean = h @ p["wm"] + p["bm"]
    latent = h @ p["wl"] + p["bl"]
    std = jnp.broadcast_to(jnp.exp(p["log_std"]), mean.shape)
    return mean, std, latent


def comm_policy_ref(x, left, right):
    lm, ls, _ = _gait_ref(x, left)
    rm, rs, lat = _gait_ref(x, right)
    return (jnp.concatenate((lm, rm), axis=0),
            jnp.concatenate((ls, rs), axis=0),
            lat)


if __name__ == "__main__":
    # Small shapes consistent with the module (split brain => even action_dim).
    batch = 8
    obs_dim = 32
    latent_dim = 16
    action_dim = 16          # each half outputs action_dim // 2
    hidden_dims = (128, 128, 128)

    root = jax.random.PRNGKey(0)
    k_x, k_l, k_r = jax.random.split(root, 3)

    x = jax.random.normal(k_x, (batch, obs_dim), jnp.float32)
    left_params = make_gait_params(k_l, obs_dim, latent_dim,
                                   action_dim // 2, hidden_dims)
    right_params = make_gait_params(k_r, obs_dim, latent_dim,
                                    action_dim // 2, hidden_dims)

    mean, std, latent = comm_policy_forward(x, left_params, right_params)
    jax.block_until_ready((mean, std, latent))

    ref_mean, ref_std, ref_latent = comm_policy_ref(x, left_params, right_params)

    assert mean.shape == (2 * batch, action_dim // 2)
    assert std.shape == (2 * batch, action_dim // 2)
    assert latent.shape == (batch, latent_dim)
    # bf16 matmul inputs, f32 accumulation -> loose tolerance vs f32 reference.
    assert bool(jnp.allclose(mean, ref_mean, atol=5e-2, rtol=5e-2))
    assert bool(jnp.allclose(latent, ref_latent, atol=5e-2, rtol=5e-2))
    assert bool(jnp.allclose(std, ref_std, atol=1e-6, rtol=1e-6))
    assert bool(jnp.all(jnp.isfinite(mean))) and bool(jnp.all(std > 0))
    print("KERNEL_OK")
</pallas_src>

<mosaic_0001>
module attributes {stable_mosaic.version = 11 : i64} {
  func.func @comm_policy_kernel(%arg0: i32, %arg1: memref<8x32xbf16, #tpu.memory_space<vmem>>, %arg2: memref<1x32x128xbf16, #tpu.memory_space<vmem>>, %arg3: memref<1x1x128xf32, #tpu.memory_space<vmem>>, %arg4: memref<1x128x128xbf16, #tpu.memory_space<vmem>>, %arg5: memref<1x1x128xf32, #tpu.memory_space<vmem>>, %arg6: memref<1x128x128xbf16, #tpu.memory_space<vmem>>, %arg7: memref<1x1x128xf32, #tpu.memory_space<vmem>>, %arg8: memref<1x128x24xbf16, #tpu.memory_space<vmem>>, %arg9: memref<1x1x24xf32, #tpu.memory_space<vmem>>, %arg10: memref<1x8x24xf32, #tpu.memory_space<vmem>>) attributes {dimension_semantics = [#tpu.dimension_semantics<parallel>], iteration_bounds = array<i64: 2>, scalar_prefetch = 0 : i64, scratch_operands = 0 : i64, tpu.core_type = #tpu.core_type<tc>, window_params = [{pipeline_mode = #tpu.pipeline_mode<synchronous>, transform_indices = @transform_0, window_bounds = array<i64: 8, 32>}, {transform_indices = @transform_1, window_bounds = array<i64: 1, 32, 128>}, {transform_indices = @transform_2, window_bounds = array<i64: 1, 1, 128>}, {transform_indices = @transform_3, window_bounds = array<i64: 1, 128, 128>}, {transform_indices = @transform_4, window_bounds = array<i64: 1, 1, 128>}, {transform_indices = @transform_5, window_bounds = array<i64: 1, 128, 128>}, {transform_indices = @transform_6, window_bounds = array<i64: 1, 1, 128>}, {transform_indices = @transform_7, window_bounds = array<i64: 1, 128, 24>}, {transform_indices = @transform_8, window_bounds = array<i64: 1, 1, 24>}, {transform_indices = @transform_9, window_bounds = array<i64: 1, 8, 24>}]} {
    %c0 = arith.constant 0 : index
    %c0_0 = arith.constant 0 : index
    %0 = vector.load %arg1[%c0, %c0_0] : memref<8x32xbf16, #tpu.memory_space<vmem>>, vector<8x32xbf16>
    %c0_1 = arith.constant 0 : index
    %c0_2 = arith.constant 0 : index
    %c0_3 = arith.constant 0 : index
    %1 = vector.load %arg2[%c0_1, %c0_2, %c0_3] : memref<1x32x128xbf16, #tpu.memory_space<vmem>>, vector<1x32x128xbf16>
    %2 = vector.shape_cast %1 : vector<1x32x128xbf16> to vector<32x128xbf16>
    %cst = arith.constant dense<0.000000e+00> : vector<8x128xf32>
    %3 = tpu.matmul %0, %2, %cst {dimension_numbers = #tpu.dot_dimension_numbers<[1], [0], [0], [1], [0, 0, 1, 1], [], []>} : vector<8x32xbf16>, vector<32x128xbf16>, vector<8x128xf32> -> vector<8x128xf32>
    %c0_4 = arith.constant 0 : index
    %c0_5 = arith.constant 0 : index
    %c0_6 = arith.constant 0 : index
    %4 = vector.load %arg3[%c0_4, %c0_5, %c0_6] : memref<1x1x128xf32, #tpu.memory_space<vmem>>, vector<1x1x128xf32>
    %5 = vector.shape_cast %4 : vector<1x1x128xf32> to vector<1x128xf32>
    %6 = vector.broadcast %5 : vector<1x128xf32> to vector<8x128xf32>
    %7 = arith.addf %3, %6 : vector<8x128xf32>
    %cst_7 = arith.constant 0.000000e+00 : f32
    %8 = vector.broadcast %cst_7 : f32 to vector<8x128xf32>
    %9 = arith.cmpf ogt, %7, %8 : vector<8x128xf32>
    %cst_8 = arith.constant 0.00999999977 : f32
    %10 = vector.broadcast %cst_8 : f32 to vector<8x128xf32>
    %11 = arith.mulf %10, %7 : vector<8x128xf32>
    %12 = arith.select %9, %7, %11 : vector<8x128xi1>, vector<8x128xf32>
    %13 = arith.truncf %12 : vector<8x128xf32> to vector<8x128xbf16>
    %c0_9 = arith.constant 0 : index
    %c0_10 = arith.constant 0 : index
    %c0_11 = arith.constant 0 : index
    %14 = vector.load %arg4[%c0_9, %c0_10, %c0_11] : memref<1x128x128xbf16, #tpu.memory_space<vmem>>, vector<1x128x128xbf16>
    %15 = vector.shape_cast %14 : vector<1x128x128xbf16> to vector<128x128xbf16>
    %cst_12 = arith.constant dense<0.000000e+00> : vector<8x128xf32>
    %16 = tpu.matmul %13, %15, %cst_12 {dimension_numbers = #tpu.dot_dimension_numbers<[1], [0], [0], [1], [0, 0, 1, 1], [], []>} : vector<8x128xbf16>, vector<128x128xbf16>, vector<8x128xf32> -> vector<8x128xf32>
    %c0_13 = arith.constant 0 : index
    %c0_14 = arith.constant 0 : index
    %c0_15 = arith.constant 0 : index
    %17 = vector.load %arg5[%c0_13, %c0_14, %c0_15] : memref<1x1x128xf32, #tpu.memory_space<vmem>>, vector<1x1x128xf32>
    %18 = vector.shape_cast %17 : vector<1x1x128xf32> to vector<1x128xf32>
    %19 = vector.broadcast %18 : vector<1x128xf32> to vector<8x128xf32>
    %20 = arith.addf %16, %19 : vector<8x128xf32>
    %cst_16 = arith.constant 0.000000e+00 : f32
    %21 = vector.broadcast %cst_16 : f32 to vector<8x128xf32>
    %22 = arith.cmpf ogt, %20, %21 : vector<8x128xf32>
    %cst_17 = arith.constant 0.00999999977 : f32
    %23 = vector.broadcast %cst_17 : f32 to vector<8x128xf32>
    %24 = arith.mulf %23, %20 : vector<8x128xf32>
    %25 = arith.select %22, %20, %24 : vector<8x128xi1>, vector<8x128xf32>
    %26 = arith.truncf %25 : vector<8x128xf32> to vector<8x128xbf16>
    %c0_18 = arith.constant 0 : index
    %c0_19 = arith.constant 0 : index
    %c0_20 = arith.constant 0 : index
    %27 = vector.load %arg6[%c0_18, %c0_19, %c0_20] : memref<1x128x128xbf16, #tpu.memory_space<vmem>>, vector<1x128x128xbf16>
    %28 = vector.shape_cast %27 : vector<1x128x128xbf16> to vector<128x128xbf16>
    %cst_21 = arith.constant dense<0.000000e+00> : vector<8x128xf32>
    %29 = tpu.matmul %26, %28, %cst_21 {dimension_numbers = #tpu.dot_dimension_numbers<[1], [0], [0], [1], [0, 0, 1, 1], [], []>} : vector<8x128xbf16>, vector<128x128xbf16>, vector<8x128xf32> -> vector<8x128xf32>
    %c0_22 = arith.constant 0 : index
    %c0_23 = arith.constant 0 : index
    %c0_24 = arith.constant 0 : index
    %30 = vector.load %arg7[%c0_22, %c0_23, %c0_24] : memref<1x1x128xf32, #tpu.memory_space<vmem>>, vector<1x1x128xf32>
    %31 = vector.shape_cast %30 : vector<1x1x128xf32> to vector<1x128xf32>
    %32 = vector.broadcast %31 : vector<1x128xf32> to vector<8x128xf32>
    %33 = arith.addf %29, %32 : vector<8x128xf32>
    %cst_25 = arith.constant 0.000000e+00 : f32
    %34 = vector.broadcast %cst_25 : f32 to vector<8x128xf32>
    %35 = arith.cmpf ogt, %33, %34 : vector<8x128xf32>
    %cst_26 = arith.constant 0.00999999977 : f32
    %36 = vector.broadcast %cst_26 : f32 to vector<8x128xf32>
    %37 = arith.mulf %36, %33 : vector<8x128xf32>
    %38 = arith.select %35, %33, %37 : vector<8x128xi1>, vector<8x128xf32>
    %39 = arith.truncf %38 : vector<8x128xf32> to vector<8x128xbf16>
    %c0_27 = arith.constant 0 : index
    %c0_28 = arith.constant 0 : index
    %c0_29 = arith.constant 0 : index
    %40 = vector.load %arg8[%c0_27, %c0_28, %c0_29] : memref<1x128x24xbf16, #tpu.memory_space<vmem>>, vector<1x128x24xbf16>
    %41 = vector.shape_cast %40 : vector<1x128x24xbf16> to vector<128x24xbf16>
    %cst_30 = arith.constant dense<0.000000e+00> : vector<8x24xf32>
    %42 = tpu.matmul %39, %41, %cst_30 {dimension_numbers = #tpu.dot_dimension_numbers<[1], [0], [0], [1], [0, 0, 1, 1], [], []>} : vector<8x128xbf16>, vector<128x24xbf16>, vector<8x24xf32> -> vector<8x24xf32>
    %c0_31 = arith.constant 0 : index
    %c0_32 = arith.constant 0 : index
    %c0_33 = arith.constant 0 : index
    %43 = vector.load %arg9[%c0_31, %c0_32, %c0_33] : memref<1x1x24xf32, #tpu.memory_space<vmem>>, vector<1x1x24xf32>
    %44 = vector.shape_cast %43 : vector<1x1x24xf32> to vector<1x24xf32>
    %45 = vector.broadcast %44 : vector<1x24xf32> to vector<8x24xf32>
    %46 = arith.addf %42, %45 : vector<8x24xf32>
    %c0_34 = arith.constant 0 : index
    %c0_35 = arith.constant 0 : index
    %c0_36 = arith.constant 0 : index
    %47 = vector.load %arg10[%c0_34, %c0_35, %c0_36] : memref<1x8x24xf32, #tpu.memory_space<vmem>>, vector<1x8x24xf32>
    %48 = vector.shape_cast %47 : vector<1x8x24xf32> to vector<8x24xf32>
    %49 = vector.shape_cast %46 : vector<8x24xf32> to vector<1x8x24xf32>
    tpu.vector_store %arg10[%c0_34, %c0_35, %c0_36], %49 {strides = array<i32>} : memref<1x8x24xf32, #tpu.memory_space<vmem>>, vector<1x8x24xf32>,
    return
  }
  func.func @transform_0(%arg0: i32) -> (i32, i32) {
    %c0_i32 = arith.constant 0 : i32
    %c0_i32_0 = arith.constant 0 : i32
    %c0_i32_1 = arith.constant 0 : i32
    return %c0_i32, %c0_i32_0 : i32, i32
  }
  func.func @transform_1(%arg0: i32) -> (i32, i32, i32) {
    %c0_i32 = arith.constant 0 : i32
    %c0_i32_0 = arith.constant 0 : i32
    %c0_i32_1 = arith.constant 0 : i32
    return %arg0, %c0_i32, %c0_i32_0 : i32, i32, i32
  }
  func.func @transform_2(%arg0: i32) -> (i32, i32, i32) {
    %c0_i32 = arith.constant 0 : i32
    %c0_i32_0 = arith.constant 0 : i32
    %c0_i32_1 = arith.constant 0 : i32
    return %arg0, %c0_i32, %c0_i32_0 : i32, i32, i32
  }
  func.func @transform_3(%arg0: i32) -> (i32, i32, i32) {
    %c0_i32 = arith.constant 0 : i32
    %c0_i32_0 = arith.constant 0 : i32
    %c0_i32_1 = arith.constant 0 : i32
    return %arg0, %c0_i32, %c0_i32_0 : i32, i32, i32
  }
  func.func @transform_4(%arg0: i32) -> (i32, i32, i32) {
    %c0_i32 = arith.constant 0 : i32
    %c0_i32_0 = arith.constant 0 : i32
    %c0_i32_1 = arith.constant 0 : i32
    return %arg0, %c0_i32, %c0_i32_0 : i32, i32, i32
  }
  func.func @transform_5(%arg0: i32) -> (i32, i32, i32) {
    %c0_i32 = arith.constant 0 : i32
    %c0_i32_0 = arith.constant 0 : i32
    %c0_i32_1 = arith.constant 0 : i32
    return %arg0, %c0_i32, %c0_i32_0 : i32, i32, i32
  }
  func.func @transform_6(%arg0: i32) -> (i32, i32, i32) {
    %c0_i32 = arith.constant 0 : i32
    %c0_i32_0 = arith.constant 0 : i32
    %c0_i32_1 = arith.constant 0 : i32
    return %arg0, %c0_i32, %c0_i32_0 : i32, i32, i32
  }
  func.func @transform_7(%arg0: i32) -> (i32, i32, i32) {
    %c0_i32 = arith.constant 0 : i32
    %c0_i32_0 = arith.constant 0 : i32
    %c0_i32_1 = arith.constant 0 : i32
    return %arg0, %c0_i32, %c0_i32_0 : i32, i32, i32
  }
  func.func @transform_8(%arg0: i32) -> (i32, i32, i32) {
    %c0_i32 = arith.constant 0 : i32
    %c0_i32_0 = arith.constant 0 : i32
    %c0_i32_1 = arith.constant 0 : i32
    return %arg0, %c0_i32, %c0_i32_0 : i32, i32, i32
  }
  func.func @transform_9(%arg0: i32) -> (i32, i32, i32) {
    %c0_i32 = arith.constant 0 : i32
    %c0_i32_0 = arith.constant 0 : i32
    %c0_i32_1 = arith.constant 0 : i32
    return %arg0, %c0_i32, %c0_i32_0 : i32, i32, i32
  }
}

</mosaic_0001>

<llo_original>
// kernel: comm_policy_forward.1
$region0: #{comm_policy_forward.1}
  #allocation0 [shape = 'u32[]', space=smem, size = 0x4, offset = 0x4, fixed_abs, tag = 'smem constant byte address 0x4 - core index']
  #allocation1 [shape = 'u32[144,128]{1,0:T(1,128)}', space=vmem, size = 0x12000, scoped, tag = 'internal scratch']
  %s0 = inlined_call_operand.vmem [shape: bf16[8,32], index: 0, kind: input, shape index: {}]
  %s1 = inlined_call_operand.vmem [shape: bf16[2,32,128], index: 1, kind: input, shape index: {}]
  %s2 = inlined_call_operand.vmem [shape: f32[2,1,128], index: 2, kind: input, shape index: {}]
  %s3 = inlined_call_operand.vmem [shape: bf16[2,128,128], index: 3, kind: input, shape index: {}]
  %s4 = inlined_call_operand.vmem [shape: f32[2,1,128], index: 4, kind: input, shape index: {}]
  %s5 = inlined_call_operand.vmem [shape: bf16[2,128,128], index: 5, kind: input, shape index: {}]
  %s6 = inlined_call_operand.vmem [shape: f32[2,1,128], index: 6, kind: input, shape index: {}]
  %s7 = inlined_call_operand.vmem [shape: bf16[2,128,24], index: 7, kind: input, shape index: {}]
  %s8 = inlined_call_operand.vmem [shape: f32[2,1,24], index: 8, kind: input, shape index: {}]
  %s9 = inlined_call_operand.vmem [shape: f32[2,8,24], index: 9, kind: output, shape index: {}]
  %s10 = sld [smem:[#allocation0]]
  $region69: #{comm_policy_forward.1} parent=0
    _
  %s12 = ssub.s32 1, %s10
  %s13 = scalar_select 0, %s12, %s10
  loop: start=0, step=1, limit=4
  $region2: #{comm_policy_forward.1} parent=0 // loop_pre_header
    _
  $region3: #{comm_policy_forward.1} parent=0 // loop_header
    %s15 = sphi 0, %s19
    %p16 = scmp.ge.s32.totalorder %s15, 4
    %s23 = sphi 0, %s23
    %s25 = sphi 0, %s23
    %s26 = sphi 0, %s25
    %s40 = sphi 0, %s26
    %s46 = sphi 0, %s48
    %s49 = sphi 0, %s46
    %s50 = sphi 0, %s49
    %s66 = sphi 0, %s50
    %s72 = sphi 0, %s74
    %s75 = sphi 0, %s72
    %s76 = sphi 0, %s75
    %s92 = sphi 0, %s76
    %s98 = sphi 0, %s100
    %s101 = sphi 0, %s98
    %s102 = sphi 0, %s101
    %s118 = sphi 0, %s102
    %s124 = sphi 0, %s126
    %s127 = sphi 0, %s124
    %s128 = sphi 0, %s127
    %s144 = sphi 0, %s128
    %s150 = sphi 0, %s152
    %s153 = sphi 0, %s150
    %s154 = sphi 0, %s153
    %s170 = sphi 0, %s154
    %s176 = sphi 0, %s178
    %s179 = sphi 0, %s176
    %s180 = sphi 0, %s179
    %s196 = sphi 0, %s180
    %s202 = sphi 0, %s204
    %s205 = sphi 0, %s202
    %s206 = sphi 0, %s205
    %s222 = sphi 0, %s206
    %s228 = sphi 0, %s230
    %s231 = sphi 0, %s228
    %s232 = sphi 0, %s231
    %s248 = sphi 0, %s232
    %s254 = sphi 0, %s256
    %s257 = sphi 0, %s254
    %s258 = sphi 0, %s257
    %s274 = sphi 0, %s258
  $region4: #{comm_policy_forward.1} parent=0 // loop_header_branch
    %18 = sbr.rel (%p16) target = $region8
  $region5: #{comm_policy_forward.1} parent=0 // loop_body
    %s20 = ssub.s32 %s15, 1
    %s21 = ssub.s32 %s15, 2
    %s22 = sadd.s32 %s15, 1
    %s24 = sadd.s32 %s23, 1
    %p27 = scmp.eq.s32.totalorder %s15, 1
    %p28 = scmp.ne.s32.totalorder %s23, %s25
    %p29 = scmp.eq.s32.totalorder %s15, 0
    %p30 = por %p28, %p29
    %p31 = scmp.ne.s32.totalorder %s23, %s25
    %p32 = scmp.eq.s32.totalorder %s20, 1
    %p33 = por %p31, %p32
    %p34 = scmp.ne.s32.totalorder %s25, %s26
    %p35 = scmp.eq.s32.totalorder %s20, 0
    %p36 = por %p34, %p35
    %p37 = scmp.ne.s32.totalorder %s25, %s26
    %p38 = scmp.eq.s32.totalorder %s21, 1
    %p39 = por %p37, %p38
    %p41 = scmp.ne.s32.totalorder %s26, %s40
    %p42 = scmp.eq.s32.totalorder %s21, 0
    %p43 = por %p41, %p42
    %s44 = ssub.s32 %s15, %s22
    %p45 = scmp.eq.s32.totalorder %s44, 0
    %s47 = sadd.s32 %s46, 1
    %s48 = scalar_select %p45, %s46, %s47
    %p51 = pneg %p45
    %p52 = scmp.eq.s32.totalorder %s15, 1
    %p53 = por %p51, %p52
    %p54 = scmp.ne.s32.totalorder %s46, %s49
    %p55 = scmp.eq.s32.totalorder %s15, 0
    %p56 = por %p54, %p55
    %p57 = scmp.ne.s32.totalorder %s46, %s49
    %p58 = scmp.eq.s32.totalorder %s20, 1
    %p59 = por %p57, %p58
    %p60 = scmp.ne.s32.totalorder %s49, %s50
    %p61 = scmp.eq.s32.totalorder %s20, 0
    %p62 = por %p60, %p61
    %p63 = scmp.ne.s32.totalorder %s49, %s50
    %p64 = scmp.eq.s32.totalorder %s21, 1
    %p65 = por %p63, %p64
    %p67 = scmp.ne.s32.totalorder %s50, %s66
    %p68 = scmp.eq.s32.totalorder %s21, 0
    %p69 = por %p67, %p68
    %s70 = ssub.s32 %s15, %s22
    %p71 = scmp.eq.s32.totalorder %s70, 0
    %s73 = sadd.s32 %s72, 1
    %s74 = scalar_select %p71, %s72, %s73
    %p77 = pneg %p71
    %p78 = scmp.eq.s32.totalorder %s15, 1
    %p79 = por %p77, %p78
    %p80 = scmp.ne.s32.totalorder %s72, %s75
    %p81 = scmp.eq.s32.totalorder %s15, 0
    %p82 = por %p80, %p81
    %p83 = scmp.ne.s32.totalorder %s72, %s75
    %p84 = scmp.eq.s32.totalorder %s20, 1
    %p85 = por %p83, %p84
    %p86 = scmp.ne.s32.totalorder %s75, %s76
    %p87 = scmp.eq.s32.totalorder %s20, 0
    %p88 = por %p86, %p87
    %p89 = scmp.ne.s32.totalorder %s75, %s76
    %p90 = scmp.eq.s32.totalorder %s21, 1
    %p91 = por %p89, %p90
    %p93 = scmp.ne.s32.totalorder %s76, %s92
    %p94 = scmp.eq.s32.totalorder %s21, 0
    %p95 = por %p93, %p94
    %s96 = ssub.s32 %s15, %s22
    %p97 = scmp.eq.s32.totalorder %s96, 0
    %s99 = sadd.s32 %s98, 1
    %s100 = scalar_select %p97, %s98, %s99
    %p103 = pneg %p97
    %p104 = scmp.eq.s32.totalorder %s15, 1
    %p105 = por %p103, %p104
    %p106 = scmp.ne.s32.totalorder %s98, %s101
    %p107 = scmp.eq.s32.totalorder %s15, 0
    %p108 = por %p106, %p107
    %p109 = scmp.ne.s32.totalorder %s98, %s101
    %p110 = scmp.eq.s32.totalorder %s20, 1
    %p111 = por %p109, %p110
    %p112 = scmp.ne.s32.totalorder %s101, %s102
    %p113 = scmp.eq.s32.totalorder %s20, 0
    %p114 = por %p112, %p113
    %p115 = scmp.ne.s32.totalorder %s101, %s102
    %p116 = scmp.eq.s32.totalorder %s21, 1
    %p117 = por %p115, %p116
    %p119 = scmp.ne.s32.totalorder %s102, %s118
    %p120 = scmp.eq.s32.totalorder %s21, 0
    %p121 = por %p119, %p120
    %s122 = ssub.s32 %s15, %s22
    %p123 = scmp.eq.s32.totalorder %s122, 0
    %s125 = sadd.s32 %s124, 1
    %s126 = scalar_select %p123, %s124, %s125
    %p129 = pneg %p123
    %p130 = scmp.eq.s32.totalorder %s15, 1
    %p131 = por %p129, %p130
    %p132 = scmp.ne.s32.totalorder %s124, %s127
    %p133 = scmp.eq.s32.totalorder %s15, 0
    %p134 = por %p132, %p133
    %p135 = scmp.ne.s32.totalorder %s124, %s127
    %p136 = scmp.eq.s32.totalorder %s20, 1
    %p137 = por %p135, %p136
    %p138 = scmp.ne.s32.totalorder %s127, %s128
    %p139 = scmp.eq.s32.totalorder %s20, 0
    %p140 = por %p138, %p139
    %p141 = scmp.ne.s32.totalorder %s127, %s128
    %p142 = scmp.eq.s32.totalorder %s21, 1
    %p143 = por %p141, %p142
    %p145 = scmp.ne.s32.totalorder %s128, %s144
    %p146 = scmp.eq.s32.totalorder %s21, 0
    %p147 = por %p145, %p146
    %s148 = ssub.s32 %s15, %s22
    %p149 = scmp.eq.s32.totalorder %s148, 0
    %s151 = sadd.s32 %s150, 1
    %s152 = scalar_select %p149, %s150, %s151
    %p155 = pneg %p149
    %p156 = scmp.eq.s32.totalorder %s15, 1
    %p157 = por %p155, %p156
    %p158 = scmp.ne.s32.totalorder %s150, %s153
    %p159 = scmp.eq.s32.totalorder %s15, 0
    %p160 = por %p158, %p159
    %p161 = scmp.ne.s32.totalorder %s150, %s153
    %p162 = scmp.eq.s32.totalorder %s20, 1
    %p163 = por %p161, %p162
    %p164 = scmp.ne.s32.totalorder %s153, %s154
    %p165 = scmp.eq.s32.totalorder %s20, 0
    %p166 = por %p164, %p165
    %p167 = scmp.ne.s32.totalorder %s153, %s154
    %p168 = scmp.eq.s32.totalorder %s21, 1
    %p169 = por %p167, %p168
    %p171 = scmp.ne.s32.totalorder %s154, %s170
    %p172 = scmp.eq.s32.totalorder %s21, 0
    %p173 = por %p171, %p172
    %s174 = ssub.s32 %s15, %s22
    %p175 = scmp.eq.s32.totalorder %s174, 0
    %s177 = sadd.s32 %s176, 1
    %s178 = scalar_select %p175, %s176, %s177
    %p181 = pneg %p175
    %p182 = scmp.eq.s32.totalorder %s15, 1
    %p183 = por %p181, %p182
    %p184 = scmp.ne.s32.totalorder %s176, %s179
    %p185 = scmp.eq.s32.totalorder %s15, 0
    %p186 = por %p184, %p185
    %p187 = scmp.ne.s32.totalorder %s176, %s179
    %p188 = scmp.eq.s32.totalorder %s20, 1
    %p189 = por %p187, %p188
    %p190 = scmp.ne.s32.totalorder %s179, %s180
    %p191 = scmp.eq.s32.totalorder %s20, 0
    %p192 = por %p190, %p191
    %p193 = scmp.ne.s32.totalorder %s179, %s180
    %p194 = scmp.eq.s32.totalorder %s21, 1
    %p195 = por %p193, %p194
    %p197 = scmp.ne.s32.totalorder %s180, %s196
    %p198 = scmp.eq.s32.totalorder %s21, 0
    %p199 = por %p197, %p198
    %s200 = ssub.s32 %s15, %s22
    %p201 = scmp.eq.s32.totalorder %s200, 0
    %s203 = sadd.s32 %s202, 1
    %s204 = scalar_select %p201, %s202, %s203
    %p207 = pneg %p201
    %p208 = scmp.eq.s32.totalorder %s15, 1
    %p209 = por %p207, %p208
    %p210 = scmp.ne.s32.totalorder %s202, %s205
    %p211 = scmp.eq.s32.totalorder %s15, 0
    %p212 = por %p210, %p211
    %p213 = scmp.ne.s32.totalorder %s202, %s205
    %p214 = scmp.eq.s32.totalorder %s20, 1
    %p215 = por %p213, %p214
    %p216 = scmp.ne.s32.totalorder %s205, %s206
    %p217 = scmp.eq.s32.totalorder %s20, 0
    %p218 = por %p216, %p217
    %p219 = scmp.ne.s32.totalorder %s205, %s206
    %p220 = scmp.eq.s32.totalorder %s21, 1
    %p221 = por %p219, %p220
    %p223 = scmp.ne.s32.totalorder %s206, %s222
    %p224 = scmp.eq.s32.totalorder %s21, 0
    %p225 = por %p223, %p224
    %s226 = ssub.s32 %s15, %s22
    %p227 = scmp.eq.s32.totalorder %s226, 0
    %s229 = sadd.s32 %s228, 1
    %s230 = scalar_select %p227, %s228, %s229
    %p233 = pneg %p227
    %p234 = scmp.eq.s32.totalorder %s15, 1
    %p235 = por %p233, %p234
    %p236 = scmp.ne.s32.totalorder %s228, %s231
    %p237 = scmp.eq.s32.totalorder %s15, 0
    %p238 = por %p236, %p237
    %p239 = scmp.ne.s32.totalorder %s228, %s231
    %p240 = scmp.eq.s32.totalorder %s20, 1
    %p241 = por %p239, %p240
    %p242 = scmp.ne.s32.totalorder %s231, %s232
    %p243 = scmp.eq.s32.totalorder %s20, 0
    %p244 = por %p242, %p243
    %p245 = scmp.ne.s32.totalorder %s231, %s232
    %p246 = scmp.eq.s32.totalorder %s21, 1
    %p247 = por %p245, %p246
    %p249 = scmp.ne.s32.totalorder %s232, %s248
    %p250 = scmp.eq.s32.totalorder %s21, 0
    %p251 = por %p249, %p250
    %s252 = ssub.s32 %s15, %s22
    %p253 = scmp.eq.s32.totalorder %s252, 0
    %s255 = sadd.s32 %s254, 1
    %s256 = scalar_select %p253, %s254, %s255
    %p259 = pneg %p253
    %p260 = scmp.eq.s32.totalorder %s15, 1
    %p261 = por %p259, %p260
    %p262 = scmp.ne.s32.totalorder %s254, %s257
    %p263 = scmp.eq.s32.totalorder %s15, 0
    %p264 = por %p262, %p263
    %p265 = scmp.ne.s32.totalorder %s254, %s257
    %p266 = scmp.eq.s32.totalorder %s20, 1
    %p267 = por %p265, %p266
    %p268 = scmp.ne.s32.totalorder %s257, %s258
    %p269 = scmp.eq.s32.totalorder %s20, 0
    %p270 = por %p268, %p269
    %p271 = scmp.ne.s32.totalorder %s257, %s258
    %p272 = scmp.eq.s32.totalorder %s21, 1
    %p273 = por %p271, %p272
    %p275 = scmp.ne.s32.totalorder %s258, %s274
    %p276 = scmp.eq.s32.totalorder %s21, 0
    %p277 = por %p275, %p276
    %p278 = scmp.le.s32.totalorder 1, %s15
    %p279 = scmp.lt.s32.totalorder %s15, 3
    %p280 = pnand %p278, %p279
    %p281 = pneg %p280
    // Predicated region
    $region9: #{comm_policy_forward.1} parent=5 // pred_check
      _
    $region10: #{comm_policy_forward.1} parent=5 // pred_check_branch
      %283 = sbr.rel (%p280) target = $region12
    $region11: #{comm_policy_forward.1} parent=5 // pred_region
      %s284 = ssub.s32 %s15, 1
      // Predicated region
      $region13: #{comm_policy_forward.1} parent=11 // pred_check
        %p285 = pneg %p36
      $region14: #{comm_policy_forward.1} parent=11 // pred_check_branch
        %287 = sbr.rel (%p285) target = $region16
      $region15: #{comm_policy_forward.1} parent=11 // pred_region
        _
      $region16: #{comm_policy_forward.1} parent=11 // pred_fallthru
        _
    $region12: #{comm_policy_forward.1} parent=5 // pred_fallthru
      _
    %p288 = scmp.lt.s32.totalorder %s15, 2
    // Predicated region
    $region17: #{comm_policy_forward.1} parent=5 // pred_check
      %p289 = pneg %p288
    $region18: #{comm_policy_forward.1} parent=5 // pred_check_branch
      %291 = sbr.rel (%p289) target = $region20
    $region19: #{comm_policy_forward.1} parent=5 // pred_region
      // Predicated region
      $region21: #{comm_policy_forward.1} parent=19 // pred_check
        %p292 = pneg %p56
      $region22: #{comm_policy_forward.1} parent=19 // pred_check_branch
        %294 = sbr.rel (%p292) target = $region24
      $region23: #{comm_policy_forward.1} parent=19 // pred_region
        %p295 = scmp.lt.s32.totalorder %s15, 1
        %s296 = scalar_select %p295, %s15, 1
        %s297 = smul.addr %s296, 4
        %s298 = smul.addr %s297, 4
        %s299 = scalar_lea.vmem %s1, %s298
      $region24: #{comm_policy_forward.1} parent=19 // pred_fallthru
        _
      // Predicated region
      $region25: #{comm_policy_forward.1} parent=19 // pred_check
        %p300 = pneg %p82
      $region26: #{comm_policy_forward.1} parent=19 // pred_check_branch
        %302 = sbr.rel (%p300) target = $region28
      $region27: #{comm_policy_forward.1} parent=19 // pred_region
        %p303 = scmp.lt.s32.totalorder %s15, 1
        %s304 = scalar_select %p303, %s15, 1
        %s305 = scalar_lea.vmem %s2, %s304
      $region28: #{comm_policy_forward.1} parent=19 // pred_fallthru
        _
      // Predicated region
      $region29: #{comm_policy_forward.1} parent=19 // pred_check
        %p306 = pneg %p108
      $region30: #{comm_policy_forward.1} parent=19 // pred_check_branch
        %308 = sbr.rel (%p306) target = $region32
      $region31: #{comm_policy_forward.1} parent=19 // pred_region
        %p309 = scmp.lt.s32.totalorder %s15, 1
        %s310 = scalar_select %p309, %s15, 1
        %s311 = smul.addr %s310, 16
        %s312 = smul.addr %s311, 4
        %s313 = scalar_lea.vmem %s3, %s312
      $region32: #{comm_policy_forward.1} parent=19 // pred_fallthru
        _
      // Predicated region
      $region33: #{comm_policy_forward.1} parent=19 // pred_check
        %p314 = pneg %p134
      $region34: #{comm_policy_forward.1} parent=19 // pred_check_branch
        %316 = sbr.rel (%p314) target = $region36
      $region35: #{comm_policy_forward.1} parent=19 // pred_region
        %p317 = scmp.lt.s32.totalorder %s15, 1
        %s318 = scalar_select %p317, %s15, 1
        %s319 = scalar_lea.vmem %s4, %s318
      $region36: #{comm_policy_forward.1} parent=19 // pred_fallthru
        _
      // Predicated region
      $region37: #{comm_policy_forward.1} parent=19 // pred_check
        %p320 = pneg %p160
      $region38: #{comm_policy_forward.1} parent=19 // pred_check_branch
        %322 = sbr.rel (%p320) target = $region40
      $region39: #{comm_policy_forward.1} parent=19 // pred_region
        %p323 = scmp.lt.s32.totalorder %s15, 1
        %s324 = scalar_select %p323, %s15, 1
        %s325 = smul.addr %s324, 16
        %s326 = smul.addr %s325, 4
        %s327 = scalar_lea.vmem %s5, %s326
      $region40: #{comm_policy_forward.1} parent=19 // pred_fallthru
        _
      // Predicated region
      $region41: #{comm_policy_forward.1} parent=19 // pred_check
        %p328 = pneg %p186
      $region42: #{comm_policy_forward.1} parent=19 // pred_check_branch
        %330 = sbr.rel (%p328) target = $region44
      $region43: #{comm_policy_forward.1} parent=19 // pred_region
        %p331 = scmp.lt.s32.totalorder %s15, 1
        %s332 = scalar_select %p331, %s15, 1
        %s333 = scalar_lea.vmem %s6, %s332
      $region44: #{comm_policy_forward.1} parent=19 // pred_fallthru
        _
      // Predicated region
      $region45: #{comm_policy_forward.1} parent=19 // pred_check
        %p334 = pneg %p212
      $region46: #{comm_policy_forward.1} parent=19 // pred_check_branch
        %336 = sbr.rel (%p334) target = $region48
      $region47: #{comm_policy_forward.1} parent=19 // pred_region
        %p337 = scmp.lt.s32.totalorder %s15, 1
        %s338 = scalar_select %p337, %s15, 1
        %s339 = smul.addr %s338, 16
        %s340 = smul.addr %s339, 4
        %s341 = scalar_lea.vmem %s7, %s340
      $region48: #{comm_policy_forward.1} parent=19 // pred_fallthru
        _
      // Predicated region
      $region49: #{comm_policy_forward.1} parent=19 // pred_check
        %p342 = pneg %p238
      $region50: #{comm_policy_forward.1} parent=19 // pred_check_branch
        %344 = sbr.rel (%p342) target = $region52
      $region51: #{comm_policy_forward.1} parent=19 // pred_region
        %p345 = scmp.lt.s32.totalorder %s15, 1
        %s346 = scalar_select %p345, %s15, 1
        %s347 = scalar_lea.vmem %s8, %s346
      $region52: #{comm_policy_forward.1} parent=19 // pred_fallthru
        _
    $region20: #{comm_policy_forward.1} parent=5 // pred_fallthru
      _
    %p348 = scmp.le.s32.totalorder 1, %s15
    %p349 = scmp.lt.s32.totalorder %s15, 3
    %p350 = pnand %p348, %p349
    %p351 = pneg %p350
    // Predicated region
    $region53: #{comm_policy_forward.1} parent=5 // pred_check
      _
    $region54: #{comm_policy_forward.1} parent=5 // pred_check_branch
      %353 = sbr.rel (%p350) target = $region56
    $region55: #{comm_policy_forward.1} parent=5 // pred_region
      %s354 = ssub.s32 %s15, 1
      %p355 = pneg %p36
      %p356 = pneg %p33
      %p357 = scmp.lt.s32.totalorder %s20, 1
      %s358 = scalar_select %p357, %s20, 1
      %s359 = smul.addr %s358, 4
      %s360 = smul.addr %s359, 4
      %s361 = scalar_lea.vmem %s1, %s360
      %p362 = pneg %p62
      %p363 = pneg %p59
      %p364 = scmp.lt.s32.totalorder %s20, 1
      %s365 = scalar_select %p364, %s20, 1
      %s366 = scalar_lea.vmem %s2, %s365
      %p367 = pneg %p88
      %p368 = pneg %p85
      %p369 = scmp.lt.s32.totalorder %s20, 1
      %s370 = scalar_select %p369, %s20, 1
      %s371 = smul.addr %s370, 16
      %s372 = smul.addr %s371, 4
      %s373 = scalar_lea.vmem %s3, %s372
      %p374 = pneg %p114
      %p375 = pneg %p111
      %p376 = scmp.lt.s32.totalorder %s20, 1
      %s377 = scalar_select %p376, %s20, 1
      %s378 = scalar_lea.vmem %s4, %s377
      %p379 = pneg %p140
      %p380 = pneg %p137
      %p381 = scmp.lt.s32.totalorder %s20, 1
      %s382 = scalar_select %p381, %s20, 1
      %s383 = smul.addr %s382, 16
      %s384 = smul.addr %s383, 4
      %s385 = scalar_lea.vmem %s5, %s384
      %p386 = pneg %p166
      %p387 = pneg %p163
      %p388 = scmp.lt.s32.totalorder %s20, 1
      %s389 = scalar_select %p388, %s20, 1
      %s390 = scalar_lea.vmem %s6, %s389
      %p391 = pneg %p192
      %p392 = pneg %p189
      %p393 = scmp.lt.s32.totalorder %s20, 1
      %s394 = scalar_select %p393, %s20, 1
      %s395 = smul.addr %s394, 16
      %s396 = smul.addr %s395, 4
      %s397 = scalar_lea.vmem %s7, %s396
      %p398 = pneg %p218
      %p399 = pneg %p215
      %p400 = scmp.lt.s32.totalorder %s20, 1
      %s401 = scalar_select %p400, %s20, 1
      %s402 = scalar_lea.vmem %s8, %s401
      %p403 = pneg %p244
      %p404 = pneg %p241
      %p405 = pneg %p270
      %p406 = pneg %p267
      %p407 = scmp.lt.s32.totalorder %s20, 1
      %s408 = scalar_select %p407, %s20, 1
      %s409 = smul.addr %s408, 8
      %s410 = scalar_lea.vmem %s9, %s409
      %p411 = scmp.lt.s32.totalorder %s20, 1
      %s412 = scalar_select %p411, %s20, 1
      %s413 = smul.addr %s412, 4
      %s414 = smul.addr %s413, 4
      %s415 = scalar_lea.vmem %s1, %s414
      %p416 = scmp.lt.s32.totalorder %s20, 1
      %s417 = scalar_select %p416, %s20, 1
      %s418 = scalar_lea.vmem %s2, %s417
      %p419 = scmp.lt.s32.totalorder %s20, 1
      %s420 = scalar_select %p419, %s20, 1
      %s421 = smul.addr %s420, 16
      %s422 = smul.addr %s421, 4
      %s423 = scalar_lea.vmem %s3, %s422
      %p424 = scmp.lt.s32.totalorder %s20, 1
      %s425 = scalar_select %p424, %s20, 1
      %s426 = scalar_lea.vmem %s4, %s425
      %p427 = scmp.lt.s32.totalorder %s20, 1
      %s428 = scalar_select %p427, %s20, 1
      %s429 = smul.addr %s428, 16
      %s430 = smul.addr %s429, 4
      %s431 = scalar_lea.vmem %s5, %s430
      %p432 = scmp.lt.s32.totalorder %s20, 1
      %s433 = scalar_select %p432, %s20, 1
      %s434 = scalar_lea.vmem %s6, %s433
      %p435 = scmp.lt.s32.totalorder %s20, 1
      %s436 = scalar_select %p435, %s20, 1
      %s437 = smul.addr %s436, 16
      %s438 = smul.addr %s437, 4
      %s439 = scalar_lea.vmem %s7, %s438
      %p440 = scmp.lt.s32.totalorder %s20, 1
      %s441 = scalar_select %p440, %s20, 1
      %s442 = scalar_lea.vmem %s8, %s441
      %p443 = scmp.lt.s32.totalorder %s20, 1
      %s444 = scalar_select %p443, %s20, 1
      %s445 = smul.addr %s444, 8
      %s446 = scalar_lea.vmem %s9, %s445
      %v448 = vld [vmem:[%s0] sm:$0xf]
      %v449 = vld [vmem:[%s415] sm:$0xf]
      %v450 = vld [vmem:[%s415 + $0x4] sm:$0xf]
      %v451 = vld [vmem:[%s415 + $0x8] sm:$0xf]
      %v452 = vld [vmem:[%s415 + $0xc] sm:$0xf]
      %v453 = vld [vmem:[%s418] sm:$0x1]
      %v455 = vlaneseq
      %v456 = vshrl.u32 %v455, 7
      %v457 = vsub.s32 0, %v456
      %v458 = vrot.slane %v453, %v457
      %v464 = vunpack.c.l.b16 %v449
      %v465 = vunpack.c.l.b16 %v450
      %v466 = vunpack.c.l.b16 %v451
      %v467 = vunpack.c.l.b16 %v452
      %v468 = vpack.c.b16 %v465, %v464
      %v469 = vpack.c.b16 %v467, %v466
      %vm472 = vcmask 261120
      %v474 = vsel %vm472, %v448, 0
      %476 = vmatprep.subr.bf16.mxu0 0
      %477 = vmatpush1.bf16.msra.mxu0 %v468
      %478 = vmatprep.subr.bf16.mxu0 0
      %479 = vmatpush1.bf16.msra.mxu0 %v469
      %480 = vmatprep.subr.bf16.mxu0 0
      %481 = vmatpush1.bf16.msra.mxu0 0
      %482 = vmatprep.subr.bf16.mxu0 0
      %483 = vmatpush1.bf16.msra.mxu0 0
      %484 = vmatprep.subr.bf16.mxu0 0
      %485 = vmatpush1.bf16.msra.mxu0 0
      %486 = vmatprep.subr.bf16.mxu0 0
      %487 = vmatpush1.bf16.msra.mxu0 0
      %488 = vmatprep.subr.bf16.mxu0 0
      %489 = vmatpush1.bf16.msra.mxu0 0
      %490 = vmatprep.subr.bf16.mxu0 0
      %491 = vmatpush1.bf16.msra.mxu0 0
      %492 = vmatprep.subr.bf16.mxu0 0
      %493 = vmatpush1.bf16.msra.mxu0 0
      %494 = vmatprep.subr.bf16.mxu0 0
      %495 = vmatpush1.bf16.msra.mxu0 0
      %496 = vmatprep.subr.bf16.mxu0 0
      %497 = vmatpush1.bf16.msra.mxu0 0
      %498 = vmatprep.subr.bf16.mxu0 0
      %499 = vmatpush1.bf16.msra.mxu0 0
      %500 = vmatprep.subr.bf16.mxu0 0
      %501 = vmatpush1.bf16.msra.mxu0 0
      %502 = vmatprep.subr.bf16.mxu0 0
      %503 = vmatpush1.bf16.msra.mxu0 0
      %504 = vmatprep.subr.bf16.mxu0 0
      %505 = vmatpush1.bf16.msra.mxu0 0
      %506 = vmatprep.subr.bf16.mxu0 0
      %507 = vmatpush1.bf16.msra.mxu0 0
      %508 = vmatprep.mubr.bf16.mxu0 0
      %509 = vmatmul.mubr.bf16.gmra.mrb[0].mxu0 %v474
      %v510 = vpop.f32.mrb[0].mxu0
      %v511 = vadd.f32 %v458, %v510
      %v512 = vpop.f32.mrb[0].mxu0
      %v513 = vpop.f32.mrb[0].mxu0
      %v514 = vpop.f32.mrb[0].mxu0
      %515 = vdwg.mxu0
      %vm516 = vcmp.gt.f32.partialorder %v511, 0.0
      %v517 = vmul.f32 %v511, 0.01
      %v518 = vsel %vm516, %v511, %v517
      %v519 = vpack.c.bf16 %v518, %v518
      %v520 = vld [vmem:[%s423] sm:$0xf]
      %v521 = vld [vmem:[%s423 + $0x4] sm:$0xf]
      %v522 = vld [vmem:[%s423 + $0x8] sm:$0xf]
      %v523 = vld [vmem:[%s423 + $0xc] sm:$0xf]
      %v524 = vld [vmem:[%s423 + $0x10] sm:$0xf]
      %v525 = vld [vmem:[%s423 + $0x14] sm:$0xf]
      %v526 = vld [vmem:[%s423 + $0x18] sm:$0xf]
      %v527 = vld [vmem:[%s423 + $0x1c] sm:$0xf]
      %v528 = vld [vmem:[%s423 + $0x20] sm:$0xf]
      %v529 = vld [vmem:[%s423 + $0x24] sm:$0xf]
      %v530 = vld [vmem:[%s423 + $0x28] sm:$0xf]
      %v531 = vld [vmem:[%s423 + $0x2c] sm:$0xf]
      %v532 = vld [vmem:[%s423 + $0x30] sm:$0xf]
      %v533 = vld [vmem:[%s423 + $0x34] sm:$0xf]
      %v534 = vld [vmem:[%s423 + $0x38] sm:$0xf]
      %v535 = vld [vmem:[%s423 + $0x3c] sm:$0xf]
      %v536 = vld [vmem:[%s426] sm:$0x1]
      %v538 = vlaneseq
      %v539 = vshrl.u32 %v538, 7
      %v540 = vsub.s32 0, %v539
      %v541 = vrot.slane %v536, %v540
      %v559 = vunpack.c.l.b16 %v520
      %v560 = vunpack.c.l.b16 %v521
      %v561 = vunpack.c.l.b16 %v522
      %v562 = vunpack.c.l.b16 %v523
      %v563 = vunpack.c.l.b16 %v524
      %v564 = vunpack.c.l.b16 %v525
      %v565 = vunpack.c.l.b16 %v526
      %v566 = vunpack.c.l.b16 %v527
      %v567 = vunpack.c.l.b16 %v528
      %v568 = vunpack.c.l.b16 %v529
      %v569 = vunpack.c.l.b16 %v530
      %v570 = vunpack.c.l.b16 %v531
      %v571 = vunpack.c.l.b16 %v532
      %v572 = vunpack.c.l.b16 %v533
      %v573 = vunpack.c.l.b16 %v534
      %v574 = vunpack.c.l.b16 %v535
      %v575 = vpack.c.b16 %v560, %v559
      %v576 = vpack.c.b16 %v562, %v561
      %v577 = vpack.c.b16 %v564, %v563
      %v578 = vpack.c.b16 %v566, %v565
      %v579 = vpack.c.b16 %v568, %v567
      %v580 = vpack.c.b16 %v570, %v569
      %v581 = vpack.c.b16 %v572, %v571
      %v582 = vpack.c.b16 %v574, %v573
      %591 = vmatprep.subr.bf16.mxu0 0
      %592 = vmatpush1.bf16.msra.mxu0 %v575
      %593 = vmatprep.subr.bf16.mxu0 0
      %594 = vmatpush1.bf16.msra.mxu0 %v576
      %595 = vmatprep.subr.bf16.mxu0 0
      %596 = vmatpush1.bf16.msra.mxu0 %v577
      %597 = vmatprep.subr.bf16.mxu0 0
      %598 = vmatpush1.bf16.msra.mxu0 %v578
      %599 = vmatprep.subr.bf16.mxu0 0
      %600 = vmatpush1.bf16.msra.mxu0 %v579
      %601 = vmatprep.subr.bf16.mxu0 0
      %602 = vmatpush1.bf16.msra.mxu0 %v580
      %603 = vmatprep.subr.bf16.mxu0 0
      %604 = vmatpush1.bf16.msra.mxu0 %v581
      %605 = vmatprep.subr.bf16.mxu0 0
      %606 = vmatpush1.bf16.msra.mxu0 %v582
      %607 = vmatprep.subr.bf16.mxu0 0
      %608 = vmatpush1.bf16.msra.mxu0 0
      %609 = vmatprep.subr.bf16.mxu0 0
      %610 = vmatpush1.bf16.msra.mxu0 0
      %611 = vmatprep.subr.bf16.mxu0 0
      %612 = vmatpush1.bf16.msra.mxu0 0
      %613 = vmatprep.subr.bf16.mxu0 0
      %614 = vmatpush1.bf16.msra.mxu0 0
      %615 = vmatprep.subr.bf16.mxu0 0
      %616 = vmatpush1.bf16.msra.mxu0 0
      %617 = vmatprep.subr.bf16.mxu0 0
      %618 = vmatpush1.bf16.msra.mxu0 0
      %619 = vmatprep.subr.bf16.mxu0 0
      %620 = vmatpush1.bf16.msra.mxu0 0
      %621 = vmatprep.subr.bf16.mxu0 0
      %622 = vmatpush1.bf16.msra.mxu0 0
      %623 = vmatprep.mubr.bf16.mxu0 0
      %624 = vmatmul.mubr.bf16.gmra.mrb[0].mxu0 %v519
      %v625 = vpop.f32.mrb[0].mxu0
      %v626 = vadd.f32 %v541, %v625
      %v627 = vpop.f32.mrb[0].mxu0
      %v628 = vpop.f32.mrb[0].mxu0
      %v629 = vpop.f32.mrb[0].mxu0
      %630 = vdwg.mxu0
      %vm631 = vcmp.gt.f32.partialorder %v626, 0.0
      %v632 = vmul.f32 %v626, 0.01
      %v633 = vsel %vm631, %v626, %v632
      %v634 = vpack.c.bf16 %v633, %v633
      %v635 = vld [vmem:[%s431] sm:$0xf]
      %v636 = vld [vmem:[%s431 + $0x4] sm:$0xf]
      %v637 = vld [vmem:[%s431 + $0x8] sm:$0xf]
      %v638 = vld [vmem:[%s431 + $0xc] sm:$0xf]
      %v639 = vld [vmem:[%s431 + $0x10] sm:$0xf]
      %v640 = vld [vmem:[%s431 + $0x14] sm:$0xf]
      %v641 = vld [vmem:[%s431 + $0x18] sm:$0xf]
      %v642 = vld [vmem:[%s431 + $0x1c] sm:$0xf]
      %v643 = vld [vmem:[%s431 + $0x20] sm:$0xf]
      %v644 = vld [vmem:[%s431 + $0x24] sm:$0xf]
      %v645 = vld [vmem:[%s431 + $0x28] sm:$0xf]
      %v646 = vld [vmem:[%s431 + $0x2c] sm:$0xf]
      %v647 = vld [vmem:[%s431 + $0x30] sm:$0xf]
      %v648 = vld [vmem:[%s431 + $0x34] sm:$0xf]
      %v649 = vld [vmem:[%s431 + $0x38] sm:$0xf]
      %v650 = vld [vmem:[%s431 + $0x3c] sm:$0xf]
      %v651 = vld [vmem:[%s434] sm:$0x1]
      %v653 = vlaneseq
      %v654 = vshrl.u32 %v653, 7
      %v655 = vsub.s32 0, %v654
      %v656 = vrot.slane %v651, %v655
      %v674 = vunpack.c.l.b16 %v635
      %v675 = vunpack.c.l.b16 %v636
      %v676 = vunpack.c.l.b16 %v637
      %v677 = vunpack.c.l.b16 %v638
      %v678 = vunpack.c.l.b16 %v639
      %v679 = vunpack.c.l.b16 %v640
      %v680 = vunpack.c.l.b16 %v641
      %v681 = vunpack.c.l.b16 %v642
      %v682 = vunpack.c.l.b16 %v643
      %v683 = vunpack.c.l.b16 %v644
      %v684 = vunpack.c.l.b16 %v645
      %v685 = vunpack.c.l.b16 %v646
      %v686 = vunpack.c.l.b16 %v647
      %v687 = vunpack.c.l.b16 %v648
      %v688 = vunpack.c.l.b16 %v649
      %v689 = vunpack.c.l.b16 %v650
      %v690 = vpack.c.b16 %v675, %v674
      %v691 = vpack.c.b16 %v677, %v676
      %v692 = vpack.c.b16 %v679, %v678
      %v693 = vpack.c.b16 %v681, %v680
      %v694 = vpack.c.b16 %v683, %v682
      %v695 = vpack.c.b16 %v685, %v684
      %v696 = vpack.c.b16 %v687, %v686
      %v697 = vpack.c.b16 %v689, %v688
      %706 = vmatprep.subr.bf16.mxu0 0
      %707 = vmatpush1.bf16.msra.mxu0 %v690
      %708 = vmatprep.subr.bf16.mxu0 0
      %709 = vmatpush1.bf16.msra.mxu0 %v691
      %710 = vmatprep.subr.bf16.mxu0 0
      %711 = vmatpush1.bf16.msra.mxu0 %v692
      %712 = vmatprep.subr.bf16.mxu0 0
      %713 = vmatpush1.bf16.msra.mxu0 %v693
      %714 = vmatprep.subr.bf16.mxu0 0
      %715 = vmatpush1.bf16.msra.mxu0 %v694
      %716 = vmatprep.subr.bf16.mxu0 0
      %717 = vmatpush1.bf16.msra.mxu0 %v695
      %718 = vmatprep.subr.bf16.mxu0 0
      %719 = vmatpush1.bf16.msra.mxu0 %v696
      %720 = vmatprep.subr.bf16.mxu0 0
      %721 = vmatpush1.bf16.msra.mxu0 %v697
      %722 = vmatprep.subr.bf16.mxu0 0
      %723 = vmatpush1.bf16.msra.mxu0 0
      %724 = vmatprep.subr.bf16.mxu0 0
      %725 = vmatpush1.bf16.msra.mxu0 0
      %726 = vmatprep.subr.bf16.mxu0 0
      %727 = vmatpush1.bf16.msra.mxu0 0
      %728 = vmatprep.subr.bf16.mxu0 0
      %729 = vmatpush1.bf16.msra.mxu0 0
      %730 = vmatprep.subr.bf16.mxu0 0
      %731 = vmatpush1.bf16.msra.mxu0 0
      %732 = vmatprep.subr.bf16.mxu0 0
      %733 = vmatpush1.bf16.msra.mxu0 0
      %734 = vmatprep.subr.bf16.mxu0 0
      %735 = vmatpush1.bf16.msra.mxu0 0
      %736 = vmatprep.subr.bf16.mxu0 0
      %737 = vmatpush1.bf16.msra.mxu0 0
      %738 = vmatprep.mubr.bf16.mxu0 0
      %739 = vmatmul.mubr.bf16.gmra.mrb[0].mxu0 %v634
      %v740 = vpop.f32.mrb[0].mxu0
      %v741 = vadd.f32 %v656, %v740
      %v742 = vpop.f32.mrb[0].mxu0
      %v743 = vpop.f32.mrb[0].mxu0
      %v744 = vpop.f32.mrb[0].mxu0
      %745 = vdwg.mxu0
      %vm746 = vcmp.gt.f32.partialorder %v741, 0.0
      %v747 = vmul.f32 %v741, 0.01
      %v748 = vsel %vm746, %v741, %v747
      %v749 = vpack.c.bf16 %v748, %v748
      %v750 = vld [vmem:[%s439] sm:$0xf]
      %v751 = vld [vmem:[%s439 + $0x4] sm:$0xf]
      %v752 = vld [vmem:[%s439 + $0x8] sm:$0xf]
      %v753 = vld [vmem:[%s439 + $0xc] sm:$0xf]
      %v754 = vld [vmem:[%s439 + $0x10] sm:$0xf]
      %v755 = vld [vmem:[%s439 + $0x14] sm:$0xf]
      %v756 = vld [vmem:[%s439 + $0x18] sm:$0xf]
      %v757 = vld [vmem:[%s439 + $0x1c] sm:$0xf]
      %v758 = vld [vmem:[%s439 + $0x20] sm:$0xf]
      %v759 = vld [vmem:[%s439 + $0x24] sm:$0xf]
      %v760 = vld [vmem:[%s439 + $0x28] sm:$0xf]
      %v761 = vld [vmem:[%s439 + $0x2c] sm:$0xf]
      %v762 = vld [vmem:[%s439 + $0x30] sm:$0xf]
      %v763 = vld [vmem:[%s439 + $0x34] sm:$0xf]
      %v764 = vld [vmem:[%s439 + $0x38] sm:$0xf]
      %v765 = vld [vmem:[%s439 + $0x3c] sm:$0xf]
      %v766 = vld [vmem:[%s442] sm:$0x1]
      %v768 = vlaneseq
      %v769 = vshrl.u32 %v768, 7
      %v770 = vsub.s32 0, %v769
      %v771 = vrot.slane %v766, %v770
      %v789 = vunpack.c.l.b16 %v750
      %v790 = vunpack.c.l.b16 %v751
      %v791 = vunpack.c.l.b16 %v752
      %v792 = vunpack.c.l.b16 %v753
      %v793 = vunpack.c.l.b16 %v754
      %v794 = vunpack.c.l.b16 %v755
      %v795 = vunpack.c.l.b16 %v756
      %v796 = vunpack.c.l.b16 %v757
      %v797 = vunpack.c.l.b16 %v758
      %v798 = vunpack.c.l.b16 %v759
      %v799 = vunpack.c.l.b16 %v760
      %v800 = vunpack.c.l.b16 %v761
      %v801 = vunpack.c.l.b16 %v762
      %v802 = vunpack.c.l.b16 %v763
      %v803 = vunpack.c.l.b16 %v764
      %v804 = vunpack.c.l.b16 %v765
      %v805 = vpack.c.b16 %v790, %v789
      %v806 = vpack.c.b16 %v792, %v791
      %v807 = vpack.c.b16 %v794, %v793
      %v808 = vpack.c.b16 %v796, %v795
      %v809 = vpack.c.b16 %v798, %v797
      %v810 = vpack.c.b16 %v800, %v799
      %v811 = vpack.c.b16 %v802, %v801
      %v812 = vpack.c.b16 %v804, %v803
      %821 = vmatprep.subr.bf16.mxu0 0
      %822 = vmatpush1.bf16.msra.mxu0 %v805
      %823 = vmatprep.subr.bf16.mxu0 0
      %824 = vmatpush1.bf16.msra.mxu0 %v806
      %825 = vmatprep.subr.bf16.mxu0 0
      %826 = vmatpush1.bf16.msra.mxu0 %v807
      %827 = vmatprep.subr.bf16.mxu0 0
      %828 = vmatpush1.bf16.msra.mxu0 %v808
      %829 = vmatprep.subr.bf16.mxu0 0
      %830 = vmatpush1.bf16.msra.mxu0 %v809
      %831 = vmatprep.subr.bf16.mxu0 0
      %832 = vmatpush1.bf16.msra.mxu0 %v810
      %833 = vmatprep.subr.bf16.mxu0 0
      %834 = vmatpush1.bf16.msra.mxu0 %v811
      %835 = vmatprep.subr.bf16.mxu0 0
      %836 = vmatpush1.bf16.msra.mxu0 %v812
      %837 = vmatprep.subr.bf16.mxu0 0
      %838 = vmatpush1.bf16.msra.mxu0 0
      %839 = vmatprep.subr.bf16.mxu0 0
      %840 = vmatpush1.bf16.msra.mxu0 0
      %841 = vmatprep.subr.bf16.mxu0 0
      %842 = vmatpush1.bf16.msra.mxu0 0
      %843 = vmatprep.subr.bf16.mxu0 0
      %844 = vmatpush1.bf16.msra.mxu0 0
      %845 = vmatprep.subr.bf16.mxu0 0
      %846 = vmatpush1.bf16.msra.mxu0 0
      %847 = vmatprep.subr.bf16.mxu0 0
      %848 = vmatpush1.bf16.msra.mxu0 0
      %849 = vmatprep.subr.bf16.mxu0 0
      %850 = vmatpush1.bf16.msra.mxu0 0
      %851 = vmatprep.subr.bf16.mxu0 0
      %852 = vmatpush1.bf16.msra.mxu0 0
      %853 = vmatprep.mubr.bf16.mxu0 0
      %854 = vmatmul.mubr.bf16.gmra.mrb[0].mxu0 %v749
      %v855 = vpop.f32.mrb[0].mxu0
      %v856 = vadd.f32 %v771, %v855
      %v857 = vpop.f32.mrb[0].mxu0
      %v858 = vpop.f32.mrb[0].mxu0
      %v859 = vpop.f32.mrb[0].mxu0
      %860 = vdwg.mxu0
      %vm861 = vcmask 195584
      %862 = vst.msk [vmem:[%s446] sm:$0xff] %vm861, %v856
      %p863 = scmp.lt.s32.totalorder %s20, 1
      %s864 = scalar_select %p863, %s20, 1
      %s865 = smul.addr %s864, 8
      %s866 = scalar_lea.vmem %s9, %s865
      // Predicated region
      $region57: #{comm_policy_forward.1} parent=55 // pred_check
        %p867 = pneg %p267
      $region58: #{comm_policy_forward.1} parent=55 // pred_check_branch
        %869 = sbr.rel (%p867) target = $region60
      $region59: #{comm_policy_forward.1} parent=55 // pred_region
        _
      $region60: #{comm_policy_forward.1} parent=55 // pred_fallthru
        _
    $region56: #{comm_policy_forward.1} parent=5 // pred_fallthru
      _
    %p870 = scmp.le.s32.totalorder 2, %s15
    // Predicated region
    $region61: #{comm_policy_forward.1} parent=5 // pred_check
      %p871 = pneg %p870
    $region62: #{comm_policy_forward.1} parent=5 // pred_check_branch
      %873 = sbr.rel (%p871) target = $region64
    $region63: #{comm_policy_forward.1} parent=5 // pred_region
      %s874 = ssub.s32 %s15, 2
      // Predicated region
      $region65: #{comm_policy_forward.1} parent=63 // pred_check
        %p875 = pneg %p273
      $region66: #{comm_policy_forward.1} parent=63 // pred_check_branch
        %877 = sbr.rel (%p875) target = $region68
      $region67: #{comm_policy_forward.1} parent=63 // pred_region
        %p878 = scmp.lt.s32.totalorder %s21, 1
        %s879 = scalar_select %p878, %s21, 1
        %s880 = smul.addr %s879, 8
        %s881 = scalar_lea.vmem %s9, %s880
      $region68: #{comm_policy_forward.1} parent=63 // pred_fallthru
        _
    $region64: #{comm_policy_forward.1} parent=5 // pred_fallthru
      _
  $region6: #{comm_policy_forward.1} parent=0 // loop_footer
    %s19 = sadd.s32 1, %s15
  $region7: #{comm_policy_forward.1} parent=0 // loop_footer_branch
    %14 = sbr.rel target = $region3
  $region8: #{comm_policy_forward.1} parent=0 // loop_exit
    _

</llo_original>
